<compile_context>
chip_gen: v7x
topology: tpu7x:2x2x1
jax: 0.10.0
libtpu: 0.0.40
codegen_flags: <defaults>
</compile_context>

<pallas_src>
import jax
import jax.numpy as jnp
from jax.experimental import pallas as pl
from jax.experimental.pallas import tpu as pltpu


def _round_up(n: int, m: int) -> int:
    return ((n + m - 1) // m) * m


def _cdiv(a: int, b: int) -> int:
    return (a + b - 1) // b


def _ddpg_kernel(x_ref, w1_ref, b1_ref, w2_ref, b2_ref, w3_ref, b3_ref, out_ref):
    # fc1 + ReLU
    h1 = jnp.dot(x_ref[...], w1_ref[...], preferred_element_type=jnp.float32)
    h1 = jnp.maximum(h1 + b1_ref[...], 0.0)
    # fc2 + ReLU
    h2 = jnp.dot(h1, w2_ref[...], preferred_element_type=jnp.float32)
    h2 = jnp.maximum(h2 + b2_ref[...], 0.0)
    # fc3 once; tanh for the actor head rides the EUP slot.
    h3 = jnp.dot(h2, w3_ref[...], preferred_element_type=jnp.float32) + b3_ref[...]
    # Pack both heads into a single lane-dense slab: [critic | actor] -> 2*half
    # lanes (a multiple of 128), stored with one full-width unmasked store.
    out_ref[...] = jnp.concatenate([h3, jnp.tanh(h3)], axis=-1).astype(out_ref.dtype)


def ddpg_forward_both(x, params, *, block_b: int = 2048):
    """Fused forward pass producing BOTH heads from one kernel launch.

    Returns (critic_out, actor_out), each [B, output_dim] float32.
    """
    w1, b1 = params["w1"], params["b1"]
    w2, b2 = params["w2"], params["b2"]
    w3, b3 = params["w3"], params["b3"]
    B, in_dim = x.shape
    h1_dim, h2_dim = w1.shape[1], w2.shape[1]
    out_dim = w3.shape[1]

    # ---- head packing: pad fc3 columns to "half" (multiple of 64) so that the
    # combined [h3 | tanh(h3)] slab is a multiple of 128 lanes wide. ----
    half = _round_up(max(out_dim, 64), 64)
    if half != out_dim:
        w3p = jnp.zeros((h2_dim, half), w3.dtype).at[:, :out_dim].set(w3)
        b3p = jnp.zeros((1, half), b3.dtype).at[:, :out_dim].set(b3)
    else:
        w3p, b3p = w3, b3
    out_w = 2 * half

    # ---- batch tiling ----
    # Big tiles amortize per-step overhead; for B > 128 force >=2 grid steps so
    # the "parallel" batch axis can split across v7x's two TensorCores.
    n_steps = max(1, _cdiv(B, block_b))
    if B > 128:
        n_steps = max(n_steps, 2)
    tb = _round_up(_cdiv(B, n_steps), 8)
    grid = (_cdiv(B, tb),)  # Pallas masks the partial edge block; no jnp.pad of x.

    x_spec = pl.BlockSpec((tb, in_dim), lambda i: (i, 0))
    out_spec = pl.BlockSpec((tb, out_w), lambda i: (i, 0))
    # Weights/biases: full array, same block every grid step -> stay resident in VMEM.
    resident = lambda a: pl.BlockSpec(a.shape, lambda i: (0, 0))

    # Advisory cost on TRUE (unpadded) dims.
    flops = 2 * B * (in_dim * h1_dim + h1_dim * h2_dim + h2_dim * out_dim)
    bytes_accessed = 4 * (
        x.size + w1.size + b1.size + w2.size + b2.size + w3.size + b3.size
        + 2 * B * out_dim
    )
    cost = pl.CostEstimate(
        flops=int(flops),
        transcendentals=int(B * out_dim),  # tanh on the actor head
        bytes_accessed=int(bytes_accessed),
    )

    out = pl.pallas_call(
        _ddpg_kernel,
        out_shape=jax.ShapeDtypeStruct((B, out_w), jnp.float32),
        grid=grid,
        in_specs=[
            x_spec,
            resident(w1), resident(b1),
            resident(w2), resident(b2),
            resident(w3p), resident(b3p),
        ],
        out_specs=out_spec,
        compiler_params=pltpu.CompilerParams(
            dimension_semantics=("parallel",),
        ),
        cost_estimate=cost,
    )(x, w1, b1, w2, b2, w3p, b3p)

    critic = out[:, :out_dim]
    actor = out[:, half:half + out_dim]
    return critic, actor


def ddpg_forward(x, params, *, actor: bool):
    """DDPGNet.forward equivalent: tanh head if actor else raw fc3 head."""
    crit, act = ddpg_forward_both(x, params)
    return act if actor else crit


def init_params(key, input_dim, hidden_in_dim, hidden_out_dim, output_dim):
    """Deterministic synthetic init (uniform +-1/sqrt(fan_in), like torch Linear default)."""
    ks = jax.random.split(key, 6)

    def linear(kw, kb, fan_in, fan_out):
        bound = 1.0 / jnp.sqrt(jnp.float32(fan_in))
        w = jax.random.uniform(kw, (fan_in, fan_out), jnp.float32, -bound, bound)
        b = jax.random.uniform(kb, (1, fan_out), jnp.float32, -bound, bound)
        return w, b

    w1, b1 = linear(ks[0], ks[1], input_dim, hidden_in_dim)
    w2, b2 = linear(ks[2], ks[3], hidden_in_dim, hidden_out_dim)
    w3, b3 = linear(ks[4], ks[5], hidden_out_dim, output_dim)
    return {"w1": w1, "b1": b1, "w2": w2, "b2": b2, "w3": w3, "b3": b3}


def _reference(x, p, actor):
    h1 = jnp.maximum(x @ p["w1"] + p["b1"], 0.0)
    h2 = jnp.maximum(h1 @ p["w2"] + p["b2"], 0.0)
    h3 = h2 @ p["w3"] + p["b3"]
    return jnp.tanh(h3) if actor else h3


if __name__ == "__main__":
    key = jax.random.PRNGKey(0)
    k_param, k_x = jax.random.split(key)

    # Small shapes consistent with the module's forward (batch of state vectors).
    batch, input_dim, hidden_in_dim, hidden_out_dim, output_dim = 8, 24, 64, 32, 4

    params = init_params(k_param, input_dim, hidden_in_dim, hidden_out_dim, output_dim)
    x = jax.random.normal(k_x, (batch, input_dim), jnp.float32)

    # One fused launch produces both heads (shared weights -> shared compute,
    # single packed lane-dense output).
    out_critic, out_actor = ddpg_forward_both(x, params)
    out_critic = jax.block_until_ready(out_critic)
    out_actor = jax.block_until_ready(out_actor)

    # The module-style single-head API still works (picks one output).
    out_actor_only = jax.block_until_ready(ddpg_forward(x, params, actor=True))

    # Sanity checks against a pure-JAX reference.
    ref_critic = _reference(x, params, actor=False)
    ref_actor = _reference(x, params, actor=True)
    assert out_critic.shape == (batch, output_dim)
    assert out_actor.shape == (batch, output_dim)
    assert jnp.allclose(out_critic, ref_critic, atol=1e-5, rtol=1e-5)
    assert jnp.allclose(out_actor, ref_actor, atol=1e-5, rtol=1e-5)
    assert jnp.allclose(out_actor_only, ref_actor, atol=1e-5, rtol=1e-5)

    # Also exercise a larger, non-multiple batch to cover the multi-step grid
    # (>=2 parallel steps) and the Pallas-masked partial edge block.
    big_b = 1000
    xb = jax.random.normal(jax.random.PRNGKey(1), (big_b, input_dim), jnp.float32)
    crit_b, act_b = ddpg_forward_both(xb, params)
    crit_b = jax.block_until_ready(crit_b)
    act_b = jax.block_until_ready(act_b)
    assert crit_b.shape == (big_b, output_dim)
    assert act_b.shape == (big_b, output_dim)
    assert jnp.allclose(crit_b, _reference(xb, params, actor=False), atol=1e-5, rtol=1e-5)
    assert jnp.allclose(act_b, _reference(xb, params, actor=True), atol=1e-5, rtol=1e-5)

    print("KERNEL_OK")
</pallas_src>

<mosaic_0001>
module attributes {stable_mosaic.version = 11 : i64} {
  func.func @_ddpg_kernel(%arg0: i32, %arg1: memref<8x24xf32, #tpu.memory_space<vmem>>, %arg2: memref<24x64xf32, #tpu.memory_space<vmem>>, %arg3: memref<1x64xf32, #tpu.memory_space<vmem>>, %arg4: memref<64x32xf32, #tpu.memory_space<vmem>>, %arg5: memref<1x32xf32, #tpu.memory_space<vmem>>, %arg6: memref<32x64xf32, #tpu.memory_space<vmem>>, %arg7: memref<1x64xf32, #tpu.memory_space<vmem>>, %arg8: memref<8x128xf32, #tpu.memory_space<vmem>>) attributes {dimension_semantics = [#tpu.dimension_semantics<parallel>], iteration_bounds = array<i64: 1>, scalar_prefetch = 0 : i64, scratch_operands = 0 : i64, tpu.core_type = #tpu.core_type<tc>, window_params = [{transform_indices = @transform_0, window_bounds = array<i64: 8, 24>}, {pipeline_mode = #tpu.pipeline_mode<synchronous>, transform_indices = @transform_1, window_bounds = array<i64: 24, 64>}, {pipeline_mode = #tpu.pipeline_mode<synchronous>, transform_indices = @transform_2, window_bounds = array<i64: 1, 64>}, {pipeline_mode = #tpu.pipeline_mode<synchronous>, transform_indices = @transform_3, window_bounds = array<i64: 64, 32>}, {pipeline_mode = #tpu.pipeline_mode<synchronous>, transform_indices = @transform_4, window_bounds = array<i64: 1, 32>}, {pipeline_mode = #tpu.pipeline_mode<synchronous>, transform_indices = @transform_5, window_bounds = array<i64: 32, 64>}, {pipeline_mode = #tpu.pipeline_mode<synchronous>, transform_indices = @transform_6, window_bounds = array<i64: 1, 64>}, {transform_indices = @transform_7, window_bounds = array<i64: 8, 128>}]} {
    %c0 = arith.constant 0 : index
    %c0_0 = arith.constant 0 : index
    %0 = vector.load %arg1[%c0, %c0_0] : memref<8x24xf32, #tpu.memory_space<vmem>>, vector<8x24xf32>
    %c0_1 = arith.constant 0 : index
    %c0_2 = arith.constant 0 : index
    %1 = vector.load %arg2[%c0_1, %c0_2] : memref<24x64xf32, #tpu.memory_space<vmem>>, vector<24x64xf32>
    %cst = arith.constant dense<0.000000e+00> : vector<8x64xf32>
    %2 = tpu.matmul %0, %1, %cst {dimension_numbers = #tpu.dot_dimension_numbers<[1], [0], [0], [1], [0, 0, 1, 1], [], []>} : vector<8x24xf32>, vector<24x64xf32>, vector<8x64xf32> -> vector<8x64xf32>
    %c0_3 = arith.constant 0 : index
    %c0_4 = arith.constant 0 : index
    %3 = vector.load %arg3[%c0_3, %c0_4] : memref<1x64xf32, #tpu.memory_space<vmem>>, vector<1x64xf32>
    %4 = vector.broadcast %3 : vector<1x64xf32> to vector<8x64xf32>
    %5 = arith.addf %2, %4 : vector<8x64xf32>
    %cst_5 = arith.constant 0.000000e+00 : f32
    %6 = vector.broadcast %cst_5 : f32 to vector<8x64xf32>
    %7 = arith.maximumf %5, %6 : vector<8x64xf32>
    %c0_6 = arith.constant 0 : index
    %c0_7 = arith.constant 0 : index
    %8 = vector.load %arg4[%c0_6, %c0_7] : memref<64x32xf32, #tpu.memory_space<vmem>>, vector<64x32xf32>
    %cst_8 = arith.constant dense<0.000000e+00> : vector<8x32xf32>
    %9 = tpu.matmul %7, %8, %cst_8 {dimension_numbers = #tpu.dot_dimension_numbers<[1], [0], [0], [1], [0, 0, 1, 1], [], []>} : vector<8x64xf32>, vector<64x32xf32>, vector<8x32xf32> -> vector<8x32xf32>
    %c0_9 = arith.constant 0 : index
    %c0_10 = arith.constant 0 : index
    %10 = vector.load %arg5[%c0_9, %c0_10] : memref<1x32xf32, #tpu.memory_space<vmem>>, vector<1x32xf32>
    %11 = vector.broadcast %10 : vector<1x32xf32> to vector<8x32xf32>
    %12 = arith.addf %9, %11 : vector<8x32xf32>
    %cst_11 = arith.constant 0.000000e+00 : f32
    %13 = vector.broadcast %cst_11 : f32 to vector<8x32xf32>
    %14 = arith.maximumf %12, %13 : vector<8x32xf32>
    %c0_12 = arith.constant 0 : index
    %c0_13 = arith.constant 0 : index
    %15 = vector.load %arg6[%c0_12, %c0_13] : memref<32x64xf32, #tpu.memory_space<vmem>>, vector<32x64xf32>
    %cst_14 = arith.constant dense<0.000000e+00> : vector<8x64xf32>
    %16 = tpu.matmul %14, %15, %cst_14 {dimension_numbers = #tpu.dot_dimension_numbers<[1], [0], [0], [1], [0, 0, 1, 1], [], []>} : vector<8x32xf32>, vector<32x64xf32>, vector<8x64xf32> -> vector<8x64xf32>
    %c0_15 = arith.constant 0 : index
    %c0_16 = arith.constant 0 : index
    %17 = vector.load %arg7[%c0_15, %c0_16] : memref<1x64xf32, #tpu.memory_space<vmem>>, vector<1x64xf32>
    %18 = vector.broadcast %17 : vector<1x64xf32> to vector<8x64xf32>
    %19 = arith.addf %16, %18 : vector<8x64xf32>
    %20 = math.tanh %19 : vector<8x64xf32>
    %21 = tpu.concatenate %19, %20 in 1 : vector<8x64xf32>, vector<8x64xf32> -> vector<8x128xf32>
    %c0_17 = arith.constant 0 : index
    %c0_18 = arith.constant 0 : index
    %22 = vector.load %arg8[%c0_17, %c0_18] : memref<8x128xf32, #tpu.memory_space<vmem>>, vector<8x128xf32>
    tpu.vector_store %arg8[%c0_17, %c0_18], %21 {strides = array<i32>} : memref<8x128xf32, #tpu.memory_space<vmem>>, vector<8x128xf32>,
    return
  }
  func.func @transform_0(%arg0: i32) -> (i32, i32) {
    %c0_i32 = arith.constant 0 : i32
    %c0_i32_0 = arith.constant 0 : i32
    return %arg0, %c0_i32 : i32, i32
  }
  func.func @transform_1(%arg0: i32) -> (i32, i32) {
    %c0_i32 = arith.constant 0 : i32
    %c0_i32_0 = arith.constant 0 : i32
    %c0_i32_1 = arith.constant 0 : i32
    return %c0_i32, %c0_i32_0 : i32, i32
  }
  func.func @transform_2(%arg0: i32) -> (i32, i32) {
    %c0_i32 = arith.constant 0 : i32
    %c0_i32_0 = arith.constant 0 : i32
    %c0_i32_1 = arith.constant 0 : i32
    return %c0_i32, %c0_i32_0 : i32, i32
  }
  func.func @transform_3(%arg0: i32) -> (i32, i32) {
    %c0_i32 = arith.constant 0 : i32
    %c0_i32_0 = arith.constant 0 : i32
    %c0_i32_1 = arith.constant 0 : i32
    return %c0_i32, %c0_i32_0 : i32, i32
  }
  func.func @transform_4(%arg0: i32) -> (i32, i32) {
    %c0_i32 = arith.constant 0 : i32
    %c0_i32_0 = arith.constant 0 : i32
    %c0_i32_1 = arith.constant 0 : i32
    return %c0_i32, %c0_i32_0 : i32, i32
  }
  func.func @transform_5(%arg0: i32) -> (i32, i32) {
    %c0_i32 = arith.constant 0 : i32
    %c0_i32_0 = arith.constant 0 : i32
    %c0_i32_1 = arith.constant 0 : i32
    return %c0_i32, %c0_i32_0 : i32, i32
  }
  func.func @transform_6(%arg0: i32) -> (i32, i32) {
    %c0_i32 = arith.constant 0 : i32
    %c0_i32_0 = arith.constant 0 : i32
    %c0_i32_1 = arith.constant 0 : i32
    return %c0_i32, %c0_i32_0 : i32, i32
  }
  func.func @transform_7(%arg0: i32) -> (i32, i32) {
    %c0_i32 = arith.constant 0 : i32
    %c0_i32_0 = arith.constant 0 : i32
    return %arg0, %c0_i32 : i32, i32
  }
}

</mosaic_0001>

<llo_original>
// kernel: tpu_custom_call.1
$region0: #{tpu_custom_call.1}
  #allocation0 [shape = 'u32[]', space=smem, size = 0x4, offset = 0x4, fixed_abs, tag = 'smem constant byte address 0x4 - core index']
  #allocation1 [shape = 'u32[144,128]{1,0:T(1,128)}', space=vmem, size = 0x12000, scoped, tag = 'internal scratch']
  %s0 = inlined_call_operand.vmem [shape: f32[8,24], index: 0, kind: input, shape index: {}]
  %s1 = inlined_call_operand.vmem [shape: f32[24,64], index: 1, kind: input, shape index: {}]
  %s2 = inlined_call_operand.vmem [shape: f32[1,64], index: 2, kind: input, shape index: {}]
  %s3 = inlined_call_operand.vmem [shape: f32[64,32], index: 3, kind: input, shape index: {}]
  %s4 = inlined_call_operand.vmem [shape: f32[1,32], index: 4, kind: input, shape index: {}]
  %s5 = inlined_call_operand.vmem [shape: f32[32,64], index: 5, kind: input, shape index: {}]
  %s6 = inlined_call_operand.vmem [shape: f32[1,64], index: 6, kind: input, shape index: {}]
  %s7 = inlined_call_operand.hbm [shape: f32[8,128], index: 7, kind: output, shape index: {}]
  %s8 = sld [smem:[#allocation0]]
  $region38: #{tpu_custom_call.1} parent=0
    _
  %s10 = ssub.s32 1, %s8
  %s11 = scalar_select 0, %s10, %s8
  $region1: #{tpu_custom_call.1} parent=0
    #allocation2 [shape = 'u8[4096]{0}', space=vmem, size = 0x1000, scoped, tag = 'output window, operand 0, single buffered']
    #allocation3 [shape = 's32[1]{0}', space=sflag, size = 0x4, scoped, tag = 'scoped memory for tpu_custom_call.1']
    %12 = vsyncpa [#allocation3], 0
    // Predicated region
    $region2: #{tpu_custom_call.1} parent=1 // pred_check
      _
    $region3: #{tpu_custom_call.1} parent=1 // pred_check_branch
      %14 = sbr.rel (0) target = $region5
    $region4: #{tpu_custom_call.1} parent=1 // pred_region
      _
    $region5: #{tpu_custom_call.1} parent=1 // pred_fallthru
      _
    // Predicated region
    $region6: #{tpu_custom_call.1} parent=1 // pred_check
      _
    $region7: #{tpu_custom_call.1} parent=1 // pred_check_branch
      %16 = sbr.rel (0) target = $region9
    $region8: #{tpu_custom_call.1} parent=1 // pred_region
      _
    $region9: #{tpu_custom_call.1} parent=1 // pred_fallthru
      _
    // Predicated region
    $region10: #{tpu_custom_call.1} parent=1 // pred_check
      _
    $region11: #{tpu_custom_call.1} parent=1 // pred_check_branch
      %18 = sbr.rel (0) target = $region13
    $region12: #{tpu_custom_call.1} parent=1 // pred_region
      _
    $region13: #{tpu_custom_call.1} parent=1 // pred_fallthru
      _
    // Predicated region
    $region14: #{tpu_custom_call.1} parent=1 // pred_check
      _
    $region15: #{tpu_custom_call.1} parent=1 // pred_check_branch
      %20 = sbr.rel (0) target = $region17
    $region16: #{tpu_custom_call.1} parent=1 // pred_region
      _
    $region17: #{tpu_custom_call.1} parent=1 // pred_fallthru
      _
    // Predicated region
    $region18: #{tpu_custom_call.1} parent=1 // pred_check
      _
    $region19: #{tpu_custom_call.1} parent=1 // pred_check_branch
      %22 = sbr.rel (0) target = $region21
    $region20: #{tpu_custom_call.1} parent=1 // pred_region
      _
    $region21: #{tpu_custom_call.1} parent=1 // pred_fallthru
      _
    // Predicated region
    $region22: #{tpu_custom_call.1} parent=1 // pred_check
      _
    $region23: #{tpu_custom_call.1} parent=1 // pred_check_branch
      %24 = sbr.rel (0) target = $region25
    $region24: #{tpu_custom_call.1} parent=1 // pred_region
      _
    $region25: #{tpu_custom_call.1} parent=1 // pred_fallthru
      _
    // Predicated region
    $region26: #{tpu_custom_call.1} parent=1 // pred_check
      _
    $region27: #{tpu_custom_call.1} parent=1 // pred_check_branch
      %26 = sbr.rel (0) target = $region29
    $region28: #{tpu_custom_call.1} parent=1 // pred_region
      _
    $region29: #{tpu_custom_call.1} parent=1 // pred_fallthru
      _
    %v27 = vld [vmem:[%s0] sm:$0xff]
    %v28 = vld [vmem:[%s1] sm:$0xff]
    %v29 = vld [vmem:[%s1 + $0x8] sm:$0xff]
    %v30 = vld [vmem:[%s1 + $0x10] sm:$0xff]
    %v31 = vld [vmem:[%s2] sm:$0x1]
    %v33 = vlaneseq
    %v34 = vshrl.u32 %v33, 7
    %v35 = vsub.s32 0, %v34
    %v36 = vrot.slane %v31, %v35
    %vm38 = vcmask 195584
    %v40 = vsel %vm38, %v27, 0
    %42 = vmatprep.subr.mxu0 0.0
    %43 = vmatpush1.msra.mxu0 %v28
    %44 = vmatprep.subr.mxu0 0.0
    %45 = vmatpush1.msra.mxu0 %v29
    %46 = vmatprep.subr.mxu0 0.0
    %47 = vmatpush1.msra.mxu0 %v30
    %48 = vmatprep.subr.mxu0 0.0
    %49 = vmatpush1.msra.mxu0 0.0
    %50 = vmatprep.subr.mxu0 0.0
    %51 = vmatpush1.msra.mxu0 0.0
    %52 = vmatprep.subr.mxu0 0.0
    %53 = vmatpush1.msra.mxu0 0.0
    %54 = vmatprep.subr.mxu0 0.0
    %55 = vmatpush1.msra.mxu0 0.0
    %56 = vmatprep.subr.mxu0 0.0
    %57 = vmatpush1.msra.mxu0 0.0
    %58 = vmatprep.subr.mxu0 0.0
    %59 = vmatpush1.msra.mxu0 0.0
    %60 = vmatprep.subr.mxu0 0.0
    %61 = vmatpush1.msra.mxu0 0.0
    %62 = vmatprep.subr.mxu0 0.0
    %63 = vmatpush1.msra.mxu0 0.0
    %64 = vmatprep.subr.mxu0 0.0
    %65 = vmatpush1.msra.mxu0 0.0
    %66 = vmatprep.subr.mxu0 0.0
    %67 = vmatpush1.msra.mxu0 0.0
    %68 = vmatprep.subr.mxu0 0.0
    %69 = vmatpush1.msra.mxu0 0.0
    %70 = vmatprep.subr.mxu0 0.0
    %71 = vmatpush1.msra.mxu0 0.0
    %72 = vmatprep.subr.mxu0 0.0
    %73 = vmatpush1.msra.mxu0 0.0
    %74 = vmatprep.subr.mxu0 0.0
    %75 = vmatpush1.msra.mxu0 0.0
    %76 = vmatprep.subr.mxu0 0.0
    %77 = vmatpush1.msra.mxu0 0.0
    %78 = vmatprep.subr.mxu0 0.0
    %79 = vmatpush1.msra.mxu0 0.0
    %80 = vmatprep.subr.mxu0 0.0
    %81 = vmatpush1.msra.mxu0 0.0
    %82 = vmatprep.subr.mxu0 0.0
    %83 = vmatpush1.msra.mxu0 0.0
    %84 = vmatprep.subr.mxu0 0.0
    %85 = vmatpush1.msra.mxu0 0.0
    %86 = vmatprep.subr.mxu0 0.0
    %87 = vmatpush1.msra.mxu0 0.0
    %88 = vmatprep.subr.mxu0 0.0
    %89 = vmatpush1.msra.mxu0 0.0
    %90 = vmatprep.subr.mxu0 0.0
    %91 = vmatpush1.msra.mxu0 0.0
    %92 = vmatprep.subr.mxu0 0.0
    %93 = vmatpush1.msra.mxu0 0.0
    %94 = vmatprep.subr.mxu0 0.0
    %95 = vmatpush1.msra.mxu0 0.0
    %96 = vmatprep.subr.mxu0 0.0
    %97 = vmatpush1.msra.mxu0 0.0
    %98 = vmatprep.subr.mxu0 0.0
    %99 = vmatpush1.msra.mxu0 0.0
    %100 = vmatprep.subr.mxu0 0.0
    %101 = vmatpush1.msra.mxu0 0.0
    %102 = vmatprep.subr.mxu0 0.0
    %103 = vmatpush1.msra.mxu0 0.0
    %104 = vmatprep.subr.mxu0 0.0
    %105 = vmatpush1.msra.mxu0 0.0
    %106 = vmatprep.mubr.f32.mxu0 0.0
    %107 = vmatmul.mubr.f32.gmra.mrb[0].mxu0 %v40
    %v108 = vpop.f32.mrb[0].mxu0
    %v109 = vadd.f32 %v36, %v108
    %v110 = vpop.f32.mrb[0].mxu0
    %111 = vdwg.mxu0
    %v112 = vmax.f32 %v109, 0.0
    %v113 = vld [vmem:[%s3] sm:$0xff]
    %v114 = vld [vmem:[%s3 + $0x8] sm:$0xff]
    %v115 = vld [vmem:[%s3 + $0x10] sm:$0xff]
    %v116 = vld [vmem:[%s3 + $0x18] sm:$0xff]
    %v117 = vld [vmem:[%s3 + $0x20] sm:$0xff]
    %v118 = vld [vmem:[%s3 + $0x28] sm:$0xff]
    %v119 = vld [vmem:[%s3 + $0x30] sm:$0xff]
    %v120 = vld [vmem:[%s3 + $0x38] sm:$0xff]
    %v121 = vld [vmem:[%s4] sm:$0x1]
    %v123 = vlaneseq
    %v124 = vshrl.u32 %v123, 7
    %v125 = vsub.s32 0, %v124
    %v126 = vrot.slane %v121, %v125
    %vm128 = vcmask 523264
    %v130 = vsel %vm128, %v112, 0
    %132 = vmatprep.subr.mxu0 0.0
    %133 = vmatpush1.msra.mxu0 %v113
    %134 = vmatprep.subr.mxu0 0.0
    %135 = vmatpush1.msra.mxu0 %v114
    %136 = vmatprep.subr.mxu0 0.0
    %137 = vmatpush1.msra.mxu0 %v115
    %138 = vmatprep.subr.mxu0 0.0
    %139 = vmatpush1.msra.mxu0 %v116
    %140 = vmatprep.subr.mxu0 0.0
    %141 = vmatpush1.msra.mxu0 %v117
    %142 = vmatprep.subr.mxu0 0.0
    %143 = vmatpush1.msra.mxu0 %v118
    %144 = vmatprep.subr.mxu0 0.0
    %145 = vmatpush1.msra.mxu0 %v119
    %146 = vmatprep.subr.mxu0 0.0
    %147 = vmatpush1.msra.mxu0 %v120
    %148 = vmatprep.subr.mxu0 0.0
    %149 = vmatpush1.msra.mxu0 0.0
    %150 = vmatprep.subr.mxu0 0.0
    %151 = vmatpush1.msra.mxu0 0.0
    %152 = vmatprep.subr.mxu0 0.0
    %153 = vmatpush1.msra.mxu0 0.0
    %154 = vmatprep.subr.mxu0 0.0
    %155 = vmatpush1.msra.mxu0 0.0
    %156 = vmatprep.subr.mxu0 0.0
    %157 = vmatpush1.msra.mxu0 0.0
    %158 = vmatprep.subr.mxu0 0.0
    %159 = vmatpush1.msra.mxu0 0.0
    %160 = vmatprep.subr.mxu0 0.0
    %161 = vmatpush1.msra.mxu0 0.0
    %162 = vmatprep.subr.mxu0 0.0
    %163 = vmatpush1.msra.mxu0 0.0
    %164 = vmatprep.subr.mxu0 0.0
    %165 = vmatpush1.msra.mxu0 0.0
    %166 = vmatprep.subr.mxu0 0.0
    %167 = vmatpush1.msra.mxu0 0.0
    %168 = vmatprep.subr.mxu0 0.0
    %169 = vmatpush1.msra.mxu0 0.0
    %170 = vmatprep.subr.mxu0 0.0
    %171 = vmatpush1.msra.mxu0 0.0
    %172 = vmatprep.subr.mxu0 0.0
    %173 = vmatpush1.msra.mxu0 0.0
    %174 = vmatprep.subr.mxu0 0.0
    %175 = vmatpush1.msra.mxu0 0.0
    %176 = vmatprep.subr.mxu0 0.0
    %177 = vmatpush1.msra.mxu0 0.0
    %178 = vmatprep.subr.mxu0 0.0
    %179 = vmatpush1.msra.mxu0 0.0
    %180 = vmatprep.subr.mxu0 0.0
    %181 = vmatpush1.msra.mxu0 0.0
    %182 = vmatprep.subr.mxu0 0.0
    %183 = vmatpush1.msra.mxu0 0.0
    %184 = vmatprep.subr.mxu0 0.0
    %185 = vmatpush1.msra.mxu0 0.0
    %186 = vmatprep.subr.mxu0 0.0
    %187 = vmatpush1.msra.mxu0 0.0
    %188 = vmatprep.subr.mxu0 0.0
    %189 = vmatpush1.msra.mxu0 0.0
    %190 = vmatprep.subr.mxu0 0.0
    %191 = vmatpush1.msra.mxu0 0.0
    %192 = vmatprep.subr.mxu0 0.0
    %193 = vmatpush1.msra.mxu0 0.0
    %194 = vmatprep.subr.mxu0 0.0
    %195 = vmatpush1.msra.mxu0 0.0
    %196 = vmatprep.mubr.f32.mxu0 0.0
    %197 = vmatmul.mubr.f32.gmra.mrb[0].mxu0 %v130
    %v198 = vpop.f32.mrb[0].mxu0
    %v199 = vadd.f32 %v126, %v198
    %v200 = vpop.f32.mrb[0].mxu0
    %201 = vdwg.mxu0
    %v202 = vmax.f32 %v199, 0.0
    %v203 = vld [vmem:[%s5] sm:$0xff]
    %v204 = vld [vmem:[%s5 + $0x8] sm:$0xff]
    %v205 = vld [vmem:[%s5 + $0x10] sm:$0xff]
    %v206 = vld [vmem:[%s5 + $0x18] sm:$0xff]
    %v207 = vld [vmem:[%s6] sm:$0x1]
    %v209 = vlaneseq
    %v210 = vshrl.u32 %v209, 7
    %v211 = vsub.s32 0, %v210
    %v212 = vrot.slane %v207, %v211
    %vm214 = vcmask 261120
    %v216 = vsel %vm214, %v202, 0
    %218 = vmatprep.subr.mxu0 0.0
    %219 = vmatpush1.msra.mxu0 %v203
    %220 = vmatprep.subr.mxu0 0.0
    %221 = vmatpush1.msra.mxu0 %v204
    %222 = vmatprep.subr.mxu0 0.0
    %223 = vmatpush1.msra.mxu0 %v205
    %224 = vmatprep.subr.mxu0 0.0
    %225 = vmatpush1.msra.mxu0 %v206
    %226 = vmatprep.subr.mxu0 0.0
    %227 = vmatpush1.msra.mxu0 0.0
    %228 = vmatprep.subr.mxu0 0.0
    %229 = vmatpush1.msra.mxu0 0.0
    %230 = vmatprep.subr.mxu0 0.0
    %231 = vmatpush1.msra.mxu0 0.0
    %232 = vmatprep.subr.mxu0 0.0
    %233 = vmatpush1.msra.mxu0 0.0
    %234 = vmatprep.subr.mxu0 0.0
    %235 = vmatpush1.msra.mxu0 0.0
    %236 = vmatprep.subr.mxu0 0.0
    %237 = vmatpush1.msra.mxu0 0.0
    %238 = vmatprep.subr.mxu0 0.0
    %239 = vmatpush1.msra.mxu0 0.0
    %240 = vmatprep.subr.mxu0 0.0
    %241 = vmatpush1.msra.mxu0 0.0
    %242 = vmatprep.subr.mxu0 0.0
    %243 = vmatpush1.msra.mxu0 0.0
    %244 = vmatprep.subr.mxu0 0.0
    %245 = vmatpush1.msra.mxu0 0.0
    %246 = vmatprep.subr.mxu0 0.0
    %247 = vmatpush1.msra.mxu0 0.0
    %248 = vmatprep.subr.mxu0 0.0
    %249 = vmatpush1.msra.mxu0 0.0
    %250 = vmatprep.subr.mxu0 0.0
    %251 = vmatpush1.msra.mxu0 0.0
    %252 = vmatprep.subr.mxu0 0.0
    %253 = vmatpush1.msra.mxu0 0.0
    %254 = vmatprep.subr.mxu0 0.0
    %255 = vmatpush1.msra.mxu0 0.0
    %256 = vmatprep.subr.mxu0 0.0
    %257 = vmatpush1.msra.mxu0 0.0
    %258 = vmatprep.subr.mxu0 0.0
    %259 = vmatpush1.msra.mxu0 0.0
    %260 = vmatprep.subr.mxu0 0.0
    %261 = vmatpush1.msra.mxu0 0.0
    %262 = vmatprep.subr.mxu0 0.0
    %263 = vmatpush1.msra.mxu0 0.0
    %264 = vmatprep.subr.mxu0 0.0
    %265 = vmatpush1.msra.mxu0 0.0
    %266 = vmatprep.subr.mxu0 0.0
    %267 = vmatpush1.msra.mxu0 0.0
    %268 = vmatprep.subr.mxu0 0.0
    %269 = vmatpush1.msra.mxu0 0.0
    %270 = vmatprep.subr.mxu0 0.0
    %271 = vmatpush1.msra.mxu0 0.0
    %272 = vmatprep.subr.mxu0 0.0
    %273 = vmatpush1.msra.mxu0 0.0
    %274 = vmatprep.subr.mxu0 0.0
    %275 = vmatpush1.msra.mxu0 0.0
    %276 = vmatprep.subr.mxu0 0.0
    %277 = vmatpush1.msra.mxu0 0.0
    %278 = vmatprep.subr.mxu0 0.0
    %279 = vmatpush1.msra.mxu0 0.0
    %280 = vmatprep.subr.mxu0 0.0
    %281 = vmatpush1.msra.mxu0 0.0
    %282 = vmatprep.mubr.f32.mxu0 0.0
    %283 = vmatmul.mubr.f32.gmra.mrb[0].mxu0 %v216
    %v284 = vpop.f32.mrb[0].mxu0
    %v285 = vadd.f32 %v212, %v284
    %v286 = vpop.f32.mrb[0].mxu0
    %287 = vdwg.mxu0
    %v288 = vtanh.pop %v285
    %290 = vrot.lane.b32.xlu0 %v288, 64
    %v291 = vpop.permute.xlu0 %290
    %v293 = vsel %vm128, %v285, %v291
    %294 = vst [vmem:[#allocation2] sm:$0xff] %v293
    // Predicated region
    $region30: #{tpu_custom_call.1} parent=1 // pred_check
      _
    $region31: #{tpu_custom_call.1} parent=1 // pred_check_branch
      %296 = sbr.rel (0) target = $region33
    $region32: #{tpu_custom_call.1} parent=1 // pred_region
      %s298 = ssub.s32 128, 128
      %299 = vsyncadd [#allocation3], %s298
      %s301 = sshll.u32 [#allocation2], 4
      %s302 = int_to_ptr.vmem [resolvable:$true] %s301
      %304 = dma.vmem_to_hbm [thread:$0]  %s302, 128, %s7, [#allocation3]
    $region33: #{tpu_custom_call.1} parent=1 // pred_fallthru
      _
    // Predicated region
    $region34: #{tpu_custom_call.1} parent=1 // pred_check
      _
    $region35: #{tpu_custom_call.1} parent=1 // pred_check_branch
      %306 = sbr.rel (0) target = $region37
    $region36: #{tpu_custom_call.1} parent=1 // pred_region
      %307 = dma.done [#allocation3], 128
    $region37: #{tpu_custom_call.1} parent=1 // pred_fallthru
      _
    %308 = vsyncpa [#allocation3], 1

</llo_original>
